<compile_context>
chip_gen: v5e
topology: v5e:2x2
jax: 0.10.0
libtpu: 0.0.40
codegen_flags: <defaults>
</compile_context>

<pallas_src>
import math
import numpy as np

import jax
import jax.numpy as jnp
from jax.experimental import pallas as pl
from jax.experimental.pallas import tpu as pltpu


def _round_up(x, m):
    return ((x + m - 1) // m) * m


# ---------------------------------------------------------------------------
# Parameter / filter construction (glue, plain JAX) — mirrors Sinc2Conv math.
# ---------------------------------------------------------------------------
def _to_mel(hz):
    return 2595.0 * np.log10(1.0 + hz / 700.0)


def _to_hz(mel):
    return 700.0 * (10.0 ** (mel / 2595.0) - 1.0)


def init_sinc2_params(out_channels, kernel_size, key,
                      sample_rate=16000, min_low_hz=50, min_band_hz=50):
    """Deterministic parameter init, same formulas as Sinc2Conv.__init__."""
    if kernel_size % 2 == 0:
        kernel_size += 1
    low_hz = 30.0
    high_hz = sample_rate / 2.0 - (min_low_hz + min_band_hz)
    mel = np.linspace(_to_mel(low_hz), _to_mel(high_hz), out_channels + 1)
    hz = _to_hz(mel) / sample_rate
    low_hz_ = jnp.asarray(hz[:-1], jnp.float32).reshape(-1, 1)
    band_hz_ = jnp.asarray(np.diff(hz), jnp.float32).reshape(-1, 1)
    # a ~ Normal(0, 1) (torch.nn.init.normal_), deterministic via PRNGKey.
    a = jax.random.normal(key, (out_channels, 1), jnp.float32)

    n_lin = jnp.linspace(0.0, float(kernel_size), kernel_size, dtype=jnp.float32)
    window_ = 0.54 - 0.46 * jnp.cos(2.0 * math.pi * n_lin / kernel_size)
    n = (kernel_size - 1) / 2.0
    n_ = (jnp.arange(-n, n + 1, dtype=jnp.float32) / sample_rate).reshape(1, -1)
    return dict(low_hz_=low_hz_, band_hz_=band_hz_, a=a,
                window_=window_, n_=n_, kernel_size=kernel_size,
                sample_rate=sample_rate, min_low_hz=min_low_hz,
                min_band_hz=min_band_hz)


def build_filters(p):
    """Reproduces the band-pass filter math from Sinc2Conv.forward."""
    K = p["kernel_size"]
    sr = p["sample_rate"]
    low = p["min_low_hz"] / sr + jnp.abs(p["low_hz_"])
    high = low + p["min_band_hz"] / sr + jnp.abs(p["band_hz_"])
    fc = (high + low) / 2.0
    bandwidth = high - low
    f_times_b = bandwidth @ p["n_"]          # (C, K)
    f_times_f = fc @ p["n_"]                 # (C, K)

    # sinc() as in the module: left half, flipped right half, 1.0 at center.
    x = np.pi * f_times_b
    half = (K - 1) // 2
    x_left = x[:, :half]
    y_left = jnp.sin(x_left) / x_left
    y_right = jnp.flip(y_left, axis=1)
    sinc = jnp.concatenate(
        [y_left, jnp.ones((x.shape[0], 1), x.dtype), y_right], axis=1)

    band_pass = 2.0 * p["a"] * jnp.power(sinc, 2) * jnp.cos(2.0 * np.pi * f_times_f)
    filters = band_pass * p["window_"]       # (C, K)
    return filters.astype(jnp.float32)


# ---------------------------------------------------------------------------
# Pallas kernel: 1-D cross-correlation (F.conv1d, in_channels=1, stride=1)
# ---------------------------------------------------------------------------
def make_conv1d(B, C_pad, K, K_pad, tile_l, lane_pad, num_tiles, L_x_pad):
    blocks_per_tile = tile_l // lane_pad     # lane_pad divides tile_l

    def conv1d_kernel(w_ref, xa_ref, xb_ref, o_ref, patch_ref):
        # Overlapping window for this L-tile: current tile plus a lane-aligned
        # lookahead block. All indexing is static; lane-dense blocks.
        win = jnp.concatenate([xa_ref[0], xb_ref[0]], axis=-1)  # (1, tile_l+lane_pad)

        # Keep the zero-padded filter taps (columns K..K_pad) away from stale
        # VMEM: NaN * 0 == NaN.  Tiny masked store, done every step so it is
        # also correct under megacore grid splitting.
        if K_pad > K:
            patch_ref[K:, :] = jnp.zeros((K_pad - K, tile_l), jnp.float32)

        # im2col into VMEM scratch: row k = window shifted by k taps.
        # TODO(synk): for production K (~251) replace the static unroll with a
        # fori_loop / pltpu.roll-based fill to bound trace size.
        for k in range(K):
            patch_ref[k:k + 1, :] = win[:, k:k + tile_l]

        # MXU matmul: (C_pad, K_pad) @ (K_pad, tile_l) -> (C_pad, tile_l)
        o_ref[0] = jnp.dot(w_ref[...], patch_ref[...],
                           preferred_element_type=jnp.float32).astype(o_ref.dtype)

    bytes_f32 = 4
    vmem_need = bytes_f32 * (
        2 * tile_l + 2 * lane_pad          # double-buffered waveform tiles
        + 2 * C_pad * tile_l               # double-buffered output tiles
        + 2 * C_pad * K_pad                # filters (resident)
        + K_pad * tile_l)                  # patch scratch
    vmem_limit = int(min(max(4 * vmem_need, 16 * 1024 * 1024), 60 * 1024 * 1024))

    cost = pl.CostEstimate(
        flops=2 * B * C_pad * K_pad * num_tiles * tile_l,
        transcendentals=0,
        bytes_accessed=bytes_f32 * (B * L_x_pad + C_pad * K_pad
                                    + B * C_pad * num_tiles * tile_l))

    return pl.pallas_call(
        conv1d_kernel,
        out_shape=jax.ShapeDtypeStruct((B, C_pad, num_tiles * tile_l), jnp.float32),
        grid=(B, num_tiles),
        in_specs=[
            # filters: whole (padded) bank, resident across the grid
            pl.BlockSpec((C_pad, K_pad), lambda b, t: (0, 0)),
            # waveform: current lane-dense L tile
            pl.BlockSpec((1, 1, tile_l), lambda b, t: (b, 0, t)),
            # waveform: lookahead block covering the K-1 sample overlap
            pl.BlockSpec((1, 1, lane_pad),
                         lambda b, t: (b, 0, (t + 1) * blocks_per_tile)),
        ],
        out_specs=pl.BlockSpec((1, C_pad, tile_l), lambda b, t: (b, 0, t)),
        scratch_shapes=[pltpu.VMEM((K_pad, tile_l), jnp.float32)],
        compiler_params=pltpu.CompilerParams(
            dimension_semantics=("parallel", "parallel"),
            vmem_limit_bytes=vmem_limit),
        cost_estimate=cost,
    )


def sinc2_conv_forward(waveforms, params, tile_l=512):
    """waveforms: (B, 1, L) float32  ->  (B, C, L - K + 1) float32."""
    # TODO(synk): only stride=1, padding=0, dilation=1 (module defaults) supported.
    B, in_ch, L = waveforms.shape
    assert in_ch == 1, "SincConv only supports one input channel"
    filters = build_filters(params)          # (C, K)
    C, K = filters.shape
    L_out = L - K + 1
    assert L_out > 0, "waveform shorter than kernel"

    C_pad = _round_up(C, 8)
    K_pad = _round_up(K, 8)
    lane_pad = _round_up(K_pad, 128)                       # lookahead width
    tile = min(tile_l, _round_up(L_out, 128))              # lane-dense tile
    tile = _round_up(tile, lane_pad)                       # lane_pad | tile
    L_out_pad = _round_up(L_out, tile)
    num_tiles = L_out_pad // tile
    L_x_pad = L_out_pad + lane_pad

    w_pad = jnp.zeros((C_pad, K_pad), jnp.float32).at[:C, :K].set(filters)
    x_pad = jnp.pad(waveforms.astype(jnp.float32),
                    ((0, 0), (0, 0), (0, L_x_pad - L)))

    conv = make_conv1d(B, C_pad, K, K_pad, tile, lane_pad, num_tiles, L_x_pad)
    out = conv(w_pad, x_pad, x_pad)          # (B, C_pad, L_out_pad)
    return out[:, :C, :L_out]


# ---------------------------------------------------------------------------
if __name__ == "__main__":
    key = jax.random.PRNGKey(0)
    k_param, k_wave = jax.random.split(key)

    out_channels = 8
    kernel_size = 16          # -> forced odd (17) inside init, as in PyTorch
    batch = 2
    n_samples = 128

    params = init_sinc2_params(out_channels, kernel_size, k_param)
    waveforms = jax.random.normal(k_wave, (batch, 1, n_samples), jnp.float32)

    out = sinc2_conv_forward(waveforms, params)
    out = jax.block_until_ready(out)

    # silent correctness check against a plain-JAX conv reference
    filters = build_filters(params)
    ref = jax.lax.conv_general_dilated(
        waveforms, filters[:, None, :],
        window_strides=(1,), padding="VALID",
        dimension_numbers=("NCH", "OIH", "NCH"))
    assert out.shape == (batch, out_channels, n_samples - params["kernel_size"] + 1)
    assert np.allclose(np.asarray(out), np.asarray(ref), rtol=1e-4, atol=1e-4)

    print("KERNEL_OK")
</pallas_src>

<mosaic_0001>
module attributes {stable_mosaic.version = 11 : i64} {
  func.func @conv1d_kernel(%arg0: i32, %arg1: i32, %arg2: memref<8x24xf32, #tpu.memory_space<vmem>>, %arg3: memref<1x1x128xf32, #tpu.memory_space<vmem>>, %arg4: memref<1x1x128xf32, #tpu.memory_space<vmem>>, %arg5: memref<1x8x128xf32, #tpu.memory_space<vmem>>, %arg6: memref<24x128xf32, #tpu.memory_space<vmem>>) attributes {dimension_semantics = [#tpu.dimension_semantics<parallel>, #tpu.dimension_semantics<parallel>], iteration_bounds = array<i64: 2, 1>, scalar_prefetch = 0 : i64, scratch_operands = 1 : i64, tpu.core_type = #tpu.core_type<tc>, window_params = [{pipeline_mode = #tpu.pipeline_mode<synchronous>, transform_indices = @transform_0, window_bounds = array<i64: 8, 24>}, {transform_indices = @transform_1, window_bounds = array<i64: 1, 1, 128>}, {transform_indices = @transform_2, window_bounds = array<i64: 1, 1, 128>}, {transform_indices = @transform_3, window_bounds = array<i64: 1, 8, 128>}]} {
    %c0 = arith.constant 0 : index
    %c0_0 = arith.constant 0 : index
    %c0_1 = arith.constant 0 : index
    %0 = vector.load %arg3[%c0, %c0_0, %c0_1] : memref<1x1x128xf32, #tpu.memory_space<vmem>>, vector<1x1x128xf32>
    %1 = vector.shape_cast %0 : vector<1x1x128xf32> to vector<1x128xf32>
    %c0_2 = arith.constant 0 : index
    %c0_3 = arith.constant 0 : index
    %c0_4 = arith.constant 0 : index
    %2 = vector.load %arg4[%c0_2, %c0_3, %c0_4] : memref<1x1x128xf32, #tpu.memory_space<vmem>>, vector<1x1x128xf32>
    %3 = vector.shape_cast %2 : vector<1x1x128xf32> to vector<1x128xf32>
    %4 = tpu.concatenate %1, %3 in 1 : vector<1x128xf32>, vector<1x128xf32> -> vector<1x256xf32>
    %cst = arith.constant 0.000000e+00 : f32
    %5 = vector.broadcast %cst : f32 to vector<7x128xf32>
    %c17 = arith.constant 17 : index
    %c0_5 = arith.constant 0 : index
    %6 = vector.load %arg6[%c17, %c0_5] : memref<24x128xf32, #tpu.memory_space<vmem>>, vector<7x128xf32>
    tpu.vector_store %arg6[%c17, %c0_5], %5 {strides = array<i32>} : memref<24x128xf32, #tpu.memory_space<vmem>>, vector<7x128xf32>,
    %7 = vector.extract_strided_slice %4 {offsets = [0, 0], sizes = [1, 128], strides = [1, 1]} : vector<1x256xf32> to vector<1x128xf32>
    %c0_6 = arith.constant 0 : index
    %c0_7 = arith.constant 0 : index
    %8 = vector.load %arg6[%c0_6, %c0_7] : memref<24x128xf32, #tpu.memory_space<vmem>>, vector<1x128xf32>
    tpu.vector_store %arg6[%c0_6, %c0_7], %7 {strides = array<i32>} : memref<24x128xf32, #tpu.memory_space<vmem>>, vector<1x128xf32>,
    %9 = vector.extract_strided_slice %4 {offsets = [0, 1], sizes = [1, 128], strides = [1, 1]} : vector<1x256xf32> to vector<1x128xf32>
    %c1 = arith.constant 1 : index
    %c0_8 = arith.constant 0 : index
    %10 = vector.load %arg6[%c1, %c0_8] : memref<24x128xf32, #tpu.memory_space<vmem>>, vector<1x128xf32>
    tpu.vector_store %arg6[%c1, %c0_8], %9 {strides = array<i32>} : memref<24x128xf32, #tpu.memory_space<vmem>>, vector<1x128xf32>,
    %11 = vector.extract_strided_slice %4 {offsets = [0, 2], sizes = [1, 128], strides = [1, 1]} : vector<1x256xf32> to vector<1x128xf32>
    %c2 = arith.constant 2 : index
    %c0_9 = arith.constant 0 : index
    %12 = vector.load %arg6[%c2, %c0_9] : memref<24x128xf32, #tpu.memory_space<vmem>>, vector<1x128xf32>
    tpu.vector_store %arg6[%c2, %c0_9], %11 {strides = array<i32>} : memref<24x128xf32, #tpu.memory_space<vmem>>, vector<1x128xf32>,
    %13 = vector.extract_strided_slice %4 {offsets = [0, 3], sizes = [1, 128], strides = [1, 1]} : vector<1x256xf32> to vector<1x128xf32>
    %c3 = arith.constant 3 : index
    %c0_10 = arith.constant 0 : index
    %14 = vector.load %arg6[%c3, %c0_10] : memref<24x128xf32, #tpu.memory_space<vmem>>, vector<1x128xf32>
    tpu.vector_store %arg6[%c3, %c0_10], %13 {strides = array<i32>} : memref<24x128xf32, #tpu.memory_space<vmem>>, vector<1x128xf32>,
    %15 = vector.extract_strided_slice %4 {offsets = [0, 4], sizes = [1, 128], strides = [1, 1]} : vector<1x256xf32> to vector<1x128xf32>
    %c4 = arith.constant 4 : index
    %c0_11 = arith.constant 0 : index
    %16 = vector.load %arg6[%c4, %c0_11] : memref<24x128xf32, #tpu.memory_space<vmem>>, vector<1x128xf32>
    tpu.vector_store %arg6[%c4, %c0_11], %15 {strides = array<i32>} : memref<24x128xf32, #tpu.memory_space<vmem>>, vector<1x128xf32>,
    %17 = vector.extract_strided_slice %4 {offsets = [0, 5], sizes = [1, 128], strides = [1, 1]} : vector<1x256xf32> to vector<1x128xf32>
    %c5 = arith.constant 5 : index
    %c0_12 = arith.constant 0 : index
    %18 = vector.load %arg6[%c5, %c0_12] : memref<24x128xf32, #tpu.memory_space<vmem>>, vector<1x128xf32>
    tpu.vector_store %arg6[%c5, %c0_12], %17 {strides = array<i32>} : memref<24x128xf32, #tpu.memory_space<vmem>>, vector<1x128xf32>,
    %19 = vector.extract_strided_slice %4 {offsets = [0, 6], sizes = [1, 128], strides = [1, 1]} : vector<1x256xf32> to vector<1x128xf32>
    %c6 = arith.constant 6 : index
    %c0_13 = arith.constant 0 : index
    %20 = vector.load %arg6[%c6, %c0_13] : memref<24x128xf32, #tpu.memory_space<vmem>>, vector<1x128xf32>
    tpu.vector_store %arg6[%c6, %c0_13], %19 {strides = array<i32>} : memref<24x128xf32, #tpu.memory_space<vmem>>, vector<1x128xf32>,
    %21 = vector.extract_strided_slice %4 {offsets = [0, 7], sizes = [1, 128], strides = [1, 1]} : vector<1x256xf32> to vector<1x128xf32>
    %c7 = arith.constant 7 : index
    %c0_14 = arith.constant 0 : index
    %22 = vector.load %arg6[%c7, %c0_14] : memref<24x128xf32, #tpu.memory_space<vmem>>, vector<1x128xf32>
    tpu.vector_store %arg6[%c7, %c0_14], %21 {strides = array<i32>} : memref<24x128xf32, #tpu.memory_space<vmem>>, vector<1x128xf32>,
    %23 = vector.extract_strided_slice %4 {offsets = [0, 8], sizes = [1, 128], strides = [1, 1]} : vector<1x256xf32> to vector<1x128xf32>
    %c8 = arith.constant 8 : index
    %c0_15 = arith.constant 0 : index
    %24 = vector.load %arg6[%c8, %c0_15] : memref<24x128xf32, #tpu.memory_space<vmem>>, vector<1x128xf32>
    tpu.vector_store %arg6[%c8, %c0_15], %23 {strides = array<i32>} : memref<24x128xf32, #tpu.memory_space<vmem>>, vector<1x128xf32>,
    %25 = vector.extract_strided_slice %4 {offsets = [0, 9], sizes = [1, 128], strides = [1, 1]} : vector<1x256xf32> to vector<1x128xf32>
    %c9 = arith.constant 9 : index
    %c0_16 = arith.constant 0 : index
    %26 = vector.load %arg6[%c9, %c0_16] : memref<24x128xf32, #tpu.memory_space<vmem>>, vector<1x128xf32>
    tpu.vector_store %arg6[%c9, %c0_16], %25 {strides = array<i32>} : memref<24x128xf32, #tpu.memory_space<vmem>>, vector<1x128xf32>,
    %27 = vector.extract_strided_slice %4 {offsets = [0, 10], sizes = [1, 128], strides = [1, 1]} : vector<1x256xf32> to vector<1x128xf32>
    %c10 = arith.constant 10 : index
    %c0_17 = arith.constant 0 : index
    %28 = vector.load %arg6[%c10, %c0_17] : memref<24x128xf32, #tpu.memory_space<vmem>>, vector<1x128xf32>
    tpu.vector_store %arg6[%c10, %c0_17], %27 {strides = array<i32>} : memref<24x128xf32, #tpu.memory_space<vmem>>, vector<1x128xf32>,
    %29 = vector.extract_strided_slice %4 {offsets = [0, 11], sizes = [1, 128], strides = [1, 1]} : vector<1x256xf32> to vector<1x128xf32>
    %c11 = arith.constant 11 : index
    %c0_18 = arith.constant 0 : index
    %30 = vector.load %arg6[%c11, %c0_18] : memref<24x128xf32, #tpu.memory_space<vmem>>, vector<1x128xf32>
    tpu.vector_store %arg6[%c11, %c0_18], %29 {strides = array<i32>} : memref<24x128xf32, #tpu.memory_space<vmem>>, vector<1x128xf32>,
    %31 = vector.extract_strided_slice %4 {offsets = [0, 12], sizes = [1, 128], strides = [1, 1]} : vector<1x256xf32> to vector<1x128xf32>
    %c12 = arith.constant 12 : index
    %c0_19 = arith.constant 0 : index
    %32 = vector.load %arg6[%c12, %c0_19] : memref<24x128xf32, #tpu.memory_space<vmem>>, vector<1x128xf32>
    tpu.vector_store %arg6[%c12, %c0_19], %31 {strides = array<i32>} : memref<24x128xf32, #tpu.memory_space<vmem>>, vector<1x128xf32>,
    %33 = vector.extract_strided_slice %4 {offsets = [0, 13], sizes = [1, 128], strides = [1, 1]} : vector<1x256xf32> to vector<1x128xf32>
    %c13 = arith.constant 13 : index
    %c0_20 = arith.constant 0 : index
    %34 = vector.load %arg6[%c13, %c0_20] : memref<24x128xf32, #tpu.memory_space<vmem>>, vector<1x128xf32>
    tpu.vector_store %arg6[%c13, %c0_20], %33 {strides = array<i32>} : memref<24x128xf32, #tpu.memory_space<vmem>>, vector<1x128xf32>,
    %35 = vector.extract_strided_slice %4 {offsets = [0, 14], sizes = [1, 128], strides = [1, 1]} : vector<1x256xf32> to vector<1x128xf32>
    %c14 = arith.constant 14 : index
    %c0_21 = arith.constant 0 : index
    %36 = vector.load %arg6[%c14, %c0_21] : memref<24x128xf32, #tpu.memory_space<vmem>>, vector<1x128xf32>
    tpu.vector_store %arg6[%c14, %c0_21], %35 {strides = array<i32>} : memref<24x128xf32, #tpu.memory_space<vmem>>, vector<1x128xf32>,
    %37 = vector.extract_strided_slice %4 {offsets = [0, 15], sizes = [1, 128], strides = [1, 1]} : vector<1x256xf32> to vector<1x128xf32>
    %c15 = arith.constant 15 : index
    %c0_22 = arith.constant 0 : index
    %38 = vector.load %arg6[%c15, %c0_22] : memref<24x128xf32, #tpu.memory_space<vmem>>, vector<1x128xf32>
    tpu.vector_store %arg6[%c15, %c0_22], %37 {strides = array<i32>} : memref<24x128xf32, #tpu.memory_space<vmem>>, vector<1x128xf32>,
    %39 = vector.extract_strided_slice %4 {offsets = [0, 16], sizes = [1, 128], strides = [1, 1]} : vector<1x256xf32> to vector<1x128xf32>
    %c16 = arith.constant 16 : index
    %c0_23 = arith.constant 0 : index
    %40 = vector.load %arg6[%c16, %c0_23] : memref<24x128xf32, #tpu.memory_space<vmem>>, vector<1x128xf32>
    tpu.vector_store %arg6[%c16, %c0_23], %39 {strides = array<i32>} : memref<24x128xf32, #tpu.memory_space<vmem>>, vector<1x128xf32>,
    %c0_24 = arith.constant 0 : index
    %c0_25 = arith.constant 0 : index
    %41 = vector.load %arg2[%c0_24, %c0_25] : memref<8x24xf32, #tpu.memory_space<vmem>>, vector<8x24xf32>
    %c0_26 = arith.constant 0 : index
    %c0_27 = arith.constant 0 : index
    %42 = vector.load %arg6[%c0_26, %c0_27] : memref<24x128xf32, #tpu.memory_space<vmem>>, vector<24x128xf32>
    %cst_28 = arith.constant dense<0.000000e+00> : vector<8x128xf32>
    %43 = tpu.matmul %41, %42, %cst_28 {dimension_numbers = #tpu.dot_dimension_numbers<[1], [0], [0], [1], [0, 0, 1, 1], [], []>} : vector<8x24xf32>, vector<24x128xf32>, vector<8x128xf32> -> vector<8x128xf32>
    %c0_29 = arith.constant 0 : index
    %c0_30 = arith.constant 0 : index
    %c0_31 = arith.constant 0 : index
    %44 = vector.load %arg5[%c0_29, %c0_30, %c0_31] : memref<1x8x128xf32, #tpu.memory_space<vmem>>, vector<1x8x128xf32>
    %45 = vector.shape_cast %44 : vector<1x8x128xf32> to vector<8x128xf32>
    %46 = vector.shape_cast %43 : vector<8x128xf32> to vector<1x8x128xf32>
    tpu.vector_store %arg5[%c0_29, %c0_30, %c0_31], %46 {strides = array<i32>} : memref<1x8x128xf32, #tpu.memory_space<vmem>>, vector<1x8x128xf32>,
    return
  }
  func.func @transform_0(%arg0: i32, %arg1: i32) -> (i32, i32) {
    %c0_i32 = arith.constant 0 : i32
    %c0_i32_0 = arith.constant 0 : i32
    %c0_i32_1 = arith.constant 0 : i32
    return %c0_i32, %c0_i32_0 : i32, i32
  }
  func.func @transform_1(%arg0: i32, %arg1: i32) -> (i32, i32, i32) {
    %c0_i32 = arith.constant 0 : i32
    %c0_i32_0 = arith.constant 0 : i32
    return %arg0, %c0_i32, %arg1 : i32, i32, i32
  }
  func.func @transform_2(%arg0: i32, %arg1: i32) -> (i32, i32, i32) {
    %c1_i32 = arith.constant 1 : i32
    %0 = arith.addi %arg1, %c1_i32 : i32
    %c1_i32_0 = arith.constant 1 : i32
    %1 = arith.muli %0, %c1_i32_0 : i32
    %c0_i32 = arith.constant 0 : i32
    %c0_i32_1 = arith.constant 0 : i32
    return %arg0, %c0_i32, %1 : i32, i32, i32
  }
  func.func @transform_3(%arg0: i32, %arg1: i32) -> (i32, i32, i32) {
    %c0_i32 = arith.constant 0 : i32
    %c0_i32_0 = arith.constant 0 : i32
    return %arg0, %c0_i32, %arg1 : i32, i32, i32
  }
}

</mosaic_0001>

<llo_original>
// kernel: tpu_custom_call.1
$region0: #{tpu_custom_call.1}
  #allocation0 [shape = 'u32[]', space=smem, size = 0x4, offset = 0x4, fixed_abs, tag = 'smem constant byte address 0x4 - core index']
  #allocation1 [shape = 'u32[72,128]{1,0:T(1,128)}', space=vmem, size = 0x9000, scoped, tag = 'internal scratch']
  #allocation2 [shape = 'f32[24,128]{1,0:T(8,128)}', space=vmem, size = 0x3000, scoped, tag = 'scratch operand']
  %s0 = inlined_call_operand.hbm [shape: f32[8,24], index: 0, kind: input, shape index: {}]
  %s1 = inlined_call_operand.hbm [shape: f32[2,1,256], index: 1, kind: input, shape index: {}]
  %s2 = inlined_call_operand.hbm [shape: f32[2,1,256], index: 2, kind: input, shape index: {}]
  %s3 = inlined_call_operand.hbm [shape: f32[2,8,128], index: 3, kind: output, shape index: {}]
  %s4 = sld [smem:[#allocation0]]
  $region57: #{tpu_custom_call.1} parent=0
    _
  %s6 = ssub.s32 1, %s4
  %s7 = scalar_select 0, %s6, %s4
  $region1: #{tpu_custom_call.1} parent=0
    #allocation3 [shape = 'u8[4096]{0}', space=vmem, size = 0x1000, scoped, tag = 'input window, operand 0, single buffered']
    #allocation4 [shape = 's32[2]{0}', space=sflag, size = 0x8, scoped, tag = 'scoped memory for tpu_custom_call.1']
    #allocation5 [shape = 's32[2]{0}', space=sflag, size = 0x8, scoped, tag = 'scoped memory for tpu_custom_call.1']
    #allocation6 [shape = 'u8[1024]{0}', space=vmem, size = 0x400, scoped, tag = 'input window, operand 1']
    #allocation7 [shape = 's32[2]{0}', space=sflag, size = 0x8, scoped, tag = 'scoped memory for tpu_custom_call.1']
    #allocation8 [shape = 'u8[1024]{0}', space=vmem, size = 0x400, scoped, tag = 'input window, operand 2']
    #allocation9 [shape = 'u8[8192]{0}', space=vmem, size = 0x2000, scoped, tag = 'output window, operand 0']
    %8 = vsyncpa [#allocation4], 0
    %9 = vsyncpa [#allocation7], 0
    %s10 = scalar_lea.sflag [#allocation7], 1
    %11 = vsyncpa %s10, 0
    %12 = vsyncpa [#allocation5], 0
    %s13 = scalar_lea.sflag [#allocation5], 1
    %14 = vsyncpa %s13, 0
    loop: start=0, step=1, limit=4
    $region2: #{tpu_custom_call.1} parent=1 // loop_pre_header
      _
    $region3: #{tpu_custom_call.1} parent=1 // loop_header
      %s16 = sphi 0, %s20
      %p17 = scmp.ge.s32.totalorder %s16, 4
      %s23 = sphi 0, %s35
      %s24 = sphi 0, %s31
      %s25 = sphi 0, %s23
      %s26 = sphi 0, %s24
      %s27 = sphi 0, %s25
      %s28 = sphi 0, %s26
      %s36 = sphi 0, %s36
      %s38 = sphi 0, %s36
      %s39 = sphi 0, %s38
      %s53 = sphi 0, %s39
      %s61 = sphi 0, %s63
      %s64 = sphi 0, %s61
      %s65 = sphi 0, %s64
      %s81 = sphi 0, %s65
      %s91 = sphi 0, %s93
      %s94 = sphi 0, %s91
      %s95 = sphi 0, %s94
      %s111 = sphi 0, %s95
      %s119 = sphi 0, %s121
      %s122 = sphi 0, %s119
      %s123 = sphi 0, %s122
      %s139 = sphi 0, %s123
    $region4: #{tpu_custom_call.1} parent=1 // loop_header_branch
      %19 = sbr.rel (%p17) target = $region8
    $region5: #{tpu_custom_call.1} parent=1 // loop_body
      %s21 = ssub.s32 %s16, 1
      %s22 = ssub.s32 %s16, 2
      %s29 = sadd.s32 1, %s24
      %p30 = scmp.ge.s32.totalorder %s29, 1
      %s31 = scalar_select %p30, 0, %s29
      %s32 = sadd.s32 1, %s23
      %s33 = scalar_select %p30, %s32, %s23
      %p34 = scmp.ge.s32.totalorder %s33, 2
      %s35 = scalar_select %p34, 0, %s33
      %s37 = sadd.s32 %s36, 1
      %p40 = scmp.eq.s32.totalorder %s16, 1
      %p41 = scmp.ne.s32.totalorder %s36, %s38
      %p42 = scmp.eq.s32.totalorder %s16, 0
      %p43 = por %p41, %p42
      %p44 = scmp.ne.s32.totalorder %s36, %s38
      %p45 = scmp.eq.s32.totalorder %s21, 1
      %p46 = por %p44, %p45
      %p47 = scmp.ne.s32.totalorder %s38, %s39
      %p48 = scmp.eq.s32.totalorder %s21, 0
      %p49 = por %p47, %p48
      %p50 = scmp.ne.s32.totalorder %s38, %s39
      %p51 = scmp.eq.s32.totalorder %s22, 1
      %p52 = por %p50, %p51
      %p54 = scmp.ne.s32.totalorder %s39, %s53
      %p55 = scmp.eq.s32.totalorder %s22, 0
      %p56 = por %p54, %p55
      %s57 = ssub.s32 %s23, %s35
      %s58 = ssub.s32 %s24, %s31
      %s59 = sor.u32 %s57, %s58
      %p60 = scmp.eq.s32.totalorder %s59, 0
      %s62 = sadd.s32 %s61, 1
      %s63 = scalar_select %p60, %s61, %s62
      %p66 = pneg %p60
      %p67 = scmp.eq.s32.totalorder %s16, 1
      %p68 = por %p66, %p67
      %p69 = scmp.ne.s32.totalorder %s61, %s64
      %p70 = scmp.eq.s32.totalorder %s16, 0
      %p71 = por %p69, %p70
      %p72 = scmp.ne.s32.totalorder %s61, %s64
      %p73 = scmp.eq.s32.totalorder %s21, 1
      %p74 = por %p72, %p73
      %p75 = scmp.ne.s32.totalorder %s64, %s65
      %p76 = scmp.eq.s32.totalorder %s21, 0
      %p77 = por %p75, %p76
      %p78 = scmp.ne.s32.totalorder %s64, %s65
      %p79 = scmp.eq.s32.totalorder %s22, 1
      %p80 = por %p78, %p79
      %p82 = scmp.ne.s32.totalorder %s65, %s81
      %p83 = scmp.eq.s32.totalorder %s22, 0
      %p84 = por %p82, %p83
      %s85 = sadd.s32 %s24, 1
      %s86 = sadd.s32 %s31, 1
      %s87 = ssub.s32 %s23, %s35
      %s88 = ssub.s32 %s85, %s86
      %s89 = sor.u32 %s87, %s88
      %p90 = scmp.eq.s32.totalorder %s89, 0
      %s92 = sadd.s32 %s91, 1
      %s93 = scalar_select %p90, %s91, %s92
      %p96 = pneg %p90
      %p97 = scmp.eq.s32.totalorder %s16, 1
      %p98 = por %p96, %p97
      %p99 = scmp.ne.s32.totalorder %s91, %s94
      %p100 = scmp.eq.s32.totalorder %s16, 0
      %p101 = por %p99, %p100
      %p102 = scmp.ne.s32.totalorder %s91, %s94
      %p103 = scmp.eq.s32.totalorder %s21, 1
      %p104 = por %p102, %p103
      %p105 = scmp.ne.s32.totalorder %s94, %s95
      %p106 = scmp.eq.s32.totalorder %s21, 0
      %p107 = por %p105, %p106
      %p108 = scmp.ne.s32.totalorder %s94, %s95
      %p109 = scmp.eq.s32.totalorder %s22, 1
      %p110 = por %p108, %p109
      %p112 = scmp.ne.s32.totalorder %s95, %s111
      %p113 = scmp.eq.s32.totalorder %s22, 0
      %p114 = por %p112, %p113
      %s115 = ssub.s32 %s23, %s35
      %s116 = ssub.s32 %s24, %s31
      %s117 = sor.u32 %s115, %s116
      %p118 = scmp.eq.s32.totalorder %s117, 0
      %s120 = sadd.s32 %s119, 1
      %s121 = scalar_select %p118, %s119, %s120
      %p124 = pneg %p118
      %p125 = scmp.eq.s32.totalorder %s16, 1
      %p126 = por %p124, %p125
      %p127 = scmp.ne.s32.totalorder %s119, %s122
      %p128 = scmp.eq.s32.totalorder %s16, 0
      %p129 = por %p127, %p128
      %p130 = scmp.ne.s32.totalorder %s119, %s122
      %p131 = scmp.eq.s32.totalorder %s21, 1
      %p132 = por %p130, %p131
      %p133 = scmp.ne.s32.totalorder %s122, %s123
      %p134 = scmp.eq.s32.totalorder %s21, 0
      %p135 = por %p133, %p134
      %p136 = scmp.ne.s32.totalorder %s122, %s123
      %p137 = scmp.eq.s32.totalorder %s22, 1
      %p138 = por %p136, %p137
      %p140 = scmp.ne.s32.totalorder %s123, %s139
      %p141 = scmp.eq.s32.totalorder %s22, 0
      %p142 = por %p140, %p141
      %p143 = scmp.le.s32.totalorder 1, %s16
      %p144 = scmp.lt.s32.totalorder %s16, 3
      %p145 = pnand %p143, %p144
      %p146 = pneg %p145
      // Predicated region
      $region9: #{tpu_custom_call.1} parent=5 // pred_check
        _
      $region10: #{tpu_custom_call.1} parent=5 // pred_check_branch
        %148 = sbr.rel (%p145) target = $region12
      $region11: #{tpu_custom_call.1} parent=5 // pred_region
        %s149 = ssub.s32 %s16, 1
        // Predicated region
        $region13: #{tpu_custom_call.1} parent=11 // pred_check
          %p150 = pneg %p49
        $region14: #{tpu_custom_call.1} parent=11 // pred_check_branch
          %152 = sbr.rel (%p150) target = $region16
        $region15: #{tpu_custom_call.1} parent=11 // pred_region
          %154 = vsyncadd [#allocation4], 0
          %s156 = sshll.u32 %s0, 4
          %s157 = int_to_ptr.hbm [resolvable:$true] %s156
          %s158 = sshll.u32 [#allocation3], 4
          %s159 = int_to_ptr.vmem [resolvable:$true] %s158
          %161 = dma.hbm_to_vmem [thread:$0]  %s157, 128, %s159, [#allocation4]
        $region16: #{tpu_custom_call.1} parent=11 // pred_fallthru
          _
      $region12: #{tpu_custom_call.1} parent=5 // pred_fallthru
        _
      %p162 = scmp.lt.s32.totalorder %s16, 2
      // Predicated region
      $region17: #{tpu_custom_call.1} parent=5 // pred_check
        %p163 = pneg %p162
      $region18: #{tpu_custom_call.1} parent=5 // pred_check_branch
        %165 = sbr.rel (%p163) target = $region20
      $region19: #{tpu_custom_call.1} parent=5 // pred_region
        // Predicated region
        $region21: #{tpu_custom_call.1} parent=19 // pred_check
          %p166 = pneg %p71
        $region22: #{tpu_custom_call.1} parent=19 // pred_check_branch
          %168 = sbr.rel (%p166) target = $region24
        $region23: #{tpu_custom_call.1} parent=19 // pred_region
          %s169 = sand.u32 %s16, 1
          %s170 = scalar_lea.sflag [#allocation7], %s169
          %s171 = sand.u32 %s61, 1
          %s172 = scalar_lea.vmem [#allocation6], %s171
          %174 = vsyncadd %s170, 0
          %s175 = smul.addr %s23, 2
          %s176 = sadd.s32 %s24, %s175
          %s177 = scalar_lea.hbm %s1, %s176
          %s179 = sshll.u32 %s177, 4
          %s180 = int_to_ptr.hbm [resolvable:$true] %s179
          %s181 = sshll.u32 %s172, 4
          %s182 = int_to_ptr.vmem [resolvable:$true] %s181
          %184 = dma.hbm_to_vmem [thread:$0]  %s180, 16, %s182, %s170
        $region24: #{tpu_custom_call.1} parent=19 // pred_fallthru
          _
        // Predicated region
        $region25: #{tpu_custom_call.1} parent=19 // pred_check
          %p185 = pneg %p101
        $region26: #{tpu_custom_call.1} parent=19 // pred_check_branch
          %187 = sbr.rel (%p185) target = $region28
        $region27: #{tpu_custom_call.1} parent=19 // pred_region
          %s188 = sand.u32 %s16, 1
          %s189 = scalar_lea.sflag [#allocation7], %s188
          %s190 = sand.u32 %s91, 1
          %s191 = scalar_lea.vmem [#allocation8], %s190
          %s192 = sadd.s32 %s24, 1
          %194 = vsyncadd %s189, 0
          %s195 = smul.addr %s23, 2
          %s196 = sadd.s32 %s192, %s195
          %s197 = scalar_lea.hbm %s2, %s196
          %s199 = sshll.u32 %s197, 4
          %s200 = int_to_ptr.hbm [resolvable:$true] %s199
          %s201 = sshll.u32 %s191, 4
          %s202 = int_to_ptr.vmem [resolvable:$true] %s201
          %204 = dma.hbm_to_vmem [thread:$0]  %s200, 16, %s202, %s189
        $region28: #{tpu_custom_call.1} parent=19 // pred_fallthru
          _
      $region20: #{tpu_custom_call.1} parent=5 // pred_fallthru
        _
      %p205 = scmp.le.s32.totalorder 1, %s16
      %p206 = scmp.lt.s32.totalorder %s16, 3
      %p207 = pnand %p205, %p206
      %p208 = pneg %p207
      // Predicated region
      $region29: #{tpu_custom_call.1} parent=5 // pred_check
        _
      $region30: #{tpu_custom_call.1} parent=5 // pred_check_branch
        %210 = sbr.rel (%p207) target = $region32
      $region31: #{tpu_custom_call.1} parent=5 // pred_region
        %s211 = ssub.s32 %s16, 1
        // Predicated region
        $region33: #{tpu_custom_call.1} parent=31 // pred_check
          %p212 = pneg %p49
        $region34: #{tpu_custom_call.1} parent=31 // pred_check_branch
          %214 = sbr.rel (%p212) target = $region36
        $region35: #{tpu_custom_call.1} parent=31 // pred_region
          %216 = dma.done [#allocation4], 128
        $region36: #{tpu_custom_call.1} parent=31 // pred_fallthru
          _
        %s217 = sand.u32 %s21, 1
        %s218 = scalar_lea.sflag [#allocation7], %s217
        %s219 = sand.u32 %s64, 1
        %s220 = scalar_lea.vmem [#allocation6], %s219
        // Predicated region
        $region37: #{tpu_custom_call.1} parent=31 // pred_check
          %p221 = pneg %p77
        $region38: #{tpu_custom_call.1} parent=31 // pred_check_branch
          %223 = sbr.rel (%p221) target = $region40
        $region39: #{tpu_custom_call.1} parent=31 // pred_region
          %225 = dma.done %s218, 16
        $region40: #{tpu_custom_call.1} parent=31 // pred_fallthru
          _
        %s226 = sand.u32 %s21, 1
        %s227 = scalar_lea.sflag [#allocation7], %s226
        %s228 = sand.u32 %s94, 1
        %s229 = scalar_lea.vmem [#allocation8], %s228
        // Predicated region
        $region41: #{tpu_custom_call.1} parent=31 // pred_check
          %p230 = pneg %p107
        $region42: #{tpu_custom_call.1} parent=31 // pred_check_branch
          %232 = sbr.rel (%p230) target = $region44
        $region43: #{tpu_custom_call.1} parent=31 // pred_region
          %234 = dma.done %s227, 16
        $region44: #{tpu_custom_call.1} parent=31 // pred_fallthru
          _
        %p235 = pneg %p49
        %p236 = pneg %p46
        %s237 = sand.u32 %s21, 1
        %s238 = scalar_lea.sflag [#allocation7], %s237
        %s239 = sand.u32 %s64, 1
        %s240 = scalar_lea.vmem [#allocation6], %s239
        %p241 = pneg %p77
        %p242 = pneg %p74
        %s243 = sand.u32 %s21, 1
        %s244 = scalar_lea.sflag [#allocation7], %s243
        %s245 = sand.u32 %s94, 1
        %s246 = scalar_lea.vmem [#allocation8], %s245
        %p247 = pneg %p107
        %p248 = pneg %p104
        %p249 = pneg %p135
        %p250 = pneg %p132
        %s251 = sand.u32 %s122, 1
        %s252 = scalar_lea.sflag [#allocation5], %s251
        %s253 = sand.u32 %s122, 1
        %s254 = smul.addr %s253, 8
        %s255 = scalar_lea.vmem [#allocation9], %s254
        %s256 = sadd.s32 %s26, 1
        %v257 = vld [vmem:[%s220] sm:$0x1]
        %v258 = vld [vmem:[%s229] sm:$0x1]
        %259 = vst [vmem:[#allocation2 + $0x11] sm:$0x7f] 0.0
        %260 = vst [vmem:[#allocation2] sm:$0x1] %v257
        %263 = vrot.lane.b32.xlu0 %v257, 127
        %v264 = vpop.permute.xlu0 %263
        %265 = vrot.lane.b32.xlu0 %v258, 127
        %v266 = vpop.permute.xlu0 %265
        %vm267 = vcmask 1039360
        %v268 = vsel %vm267, %v264, %v266
        %270 = vst [vmem:[#allocation2 + $0x1] sm:$0x1] %v268
        %271 = vrot.lane.b32.xlu0 %v257, 126
        %v272 = vpop.permute.xlu0 %271
        %273 = vrot.lane.b32.xlu0 %v258, 126
        %v274 = vpop.permute.xlu0 %273
        %vm275 = vcmask 1031168
        %v276 = vsel %vm275, %v272, %v274
        %278 = vst [vmem:[#allocation2 + $0x2] sm:$0x1] %v276
        %279 = vrot.lane.b32.xlu0 %v257, 125
        %v280 = vpop.permute.xlu0 %279
        %281 = vrot.lane.b32.xlu0 %v258, 125
        %v282 = vpop.permute.xlu0 %281
        %vm283 = vcmask 1022976
        %v284 = vsel %vm283, %v280, %v282
        %286 = vst [vmem:[#allocation2 + $0x3] sm:$0x1] %v284
        %287 = vrot.lane.b32.xlu0 %v257, 124
        %v288 = vpop.permute.xlu0 %287
        %289 = vrot.lane.b32.xlu0 %v258, 124
        %v290 = vpop.permute.xlu0 %289
        %vm291 = vcmask 1014784
        %v292 = vsel %vm291, %v288, %v290
        %294 = vst [vmem:[#allocation2 + $0x4] sm:$0x1] %v292
        %295 = vrot.lane.b32.xlu0 %v257, 123
        %v296 = vpop.permute.xlu0 %295
        %297 = vrot.lane.b32.xlu0 %v258, 123
        %v298 = vpop.permute.xlu0 %297
        %vm299 = vcmask 1006592
        %v300 = vsel %vm299, %v296, %v298
        %302 = vst [vmem:[#allocation2 + $0x5] sm:$0x1] %v300
        %303 = vrot.lane.b32.xlu0 %v257, 122
        %v304 = vpop.permute.xlu0 %303
        %305 = vrot.lane.b32.xlu0 %v258, 122
        %v306 = vpop.permute.xlu0 %305
        %vm307 = vcmask 998400
        %v308 = vsel %vm307, %v304, %v306
        %310 = vst [vmem:[#allocation2 + $0x6] sm:$0x1] %v308
        %311 = vrot.lane.b32.xlu0 %v257, 121
        %v312 = vpop.permute.xlu0 %311
        %313 = vrot.lane.b32.xlu0 %v258, 121
        %v314 = vpop.permute.xlu0 %313
        %vm315 = vcmask 990208
        %v316 = vsel %vm315, %v312, %v314
        %318 = vst [vmem:[#allocation2 + $0x7] sm:$0x1] %v316
        %319 = vrot.lane.b32.xlu0 %v257, 120
        %v320 = vpop.permute.xlu0 %319
        %321 = vrot.lane.b32.xlu0 %v258, 120
        %v322 = vpop.permute.xlu0 %321
        %vm323 = vcmask 982016
        %v324 = vsel %vm323, %v320, %v322
        %326 = vst [vmem:[#allocation2 + $0x8] sm:$0x1] %v324
        %327 = vrot.lane.b32.xlu0 %v257, 119
        %v328 = vpop.permute.xlu0 %327
        %329 = vrot.lane.b32.xlu0 %v258, 119
        %v330 = vpop.permute.xlu0 %329
        %vm331 = vcmask 973824
        %v332 = vsel %vm331, %v328, %v330
        %334 = vst [vmem:[#allocation2 + $0x9] sm:$0x1] %v332
        %335 = vrot.lane.b32.xlu0 %v257, 118
        %v336 = vpop.permute.xlu0 %335
        %337 = vrot.lane.b32.xlu0 %v258, 118
        %v338 = vpop.permute.xlu0 %337
        %vm339 = vcmask 965632
        %v340 = vsel %vm339, %v336, %v338
        %342 = vst [vmem:[#allocation2 + $0xa] sm:$0x1] %v340
        %343 = vrot.lane.b32.xlu0 %v257, 117
        %v344 = vpop.permute.xlu0 %343
        %345 = vrot.lane.b32.xlu0 %v258, 117
        %v346 = vpop.permute.xlu0 %345
        %vm347 = vcmask 957440
        %v348 = vsel %vm347, %v344, %v346
        %350 = vst [vmem:[#allocation2 + $0xb] sm:$0x1] %v348
        %351 = vrot.lane.b32.xlu0 %v257, 116
        %v352 = vpop.permute.xlu0 %351
        %353 = vrot.lane.b32.xlu0 %v258, 116
        %v354 = vpop.permute.xlu0 %353
        %vm355 = vcmask 949248
        %v356 = vsel %vm355, %v352, %v354
        %358 = vst [vmem:[#allocation2 + $0xc] sm:$0x1] %v356
        %359 = vrot.lane.b32.xlu0 %v257, 115
        %v360 = vpop.permute.xlu0 %359
        %361 = vrot.lane.b32.xlu0 %v258, 115
        %v362 = vpop.permute.xlu0 %361
        %vm363 = vcmask 941056
        %v364 = vsel %vm363, %v360, %v362
        %366 = vst [vmem:[#allocation2 + $0xd] sm:$0x1] %v364
        %367 = vrot.lane.b32.xlu0 %v257, 114
        %v368 = vpop.permute.xlu0 %367
        %369 = vrot.lane.b32.xlu0 %v258, 114
        %v370 = vpop.permute.xlu0 %369
        %vm371 = vcmask 932864
        %v372 = vsel %vm371, %v368, %v370
        %374 = vst [vmem:[#allocation2 + $0xe] sm:$0x1] %v372
        %375 = vrot.lane.b32.xlu0 %v257, 113
        %v376 = vpop.permute.xlu0 %375
        %377 = vrot.lane.b32.xlu0 %v258, 113
        %v378 = vpop.permute.xlu0 %377
        %vm379 = vcmask 924672
        %v380 = vsel %vm379, %v376, %v378
        %382 = vst [vmem:[#allocation2 + $0xf] sm:$0x1] %v380
        %383 = vrot.lane.b32.xlu0 %v257, 112
        %v384 = vpop.permute.xlu0 %383
        %385 = vrot.lane.b32.xlu0 %v258, 112
        %v386 = vpop.permute.xlu0 %385
        %vm387 = vcmask 916480
        %v388 = vsel %vm387, %v384, %v386
        %390 = vst [vmem:[#allocation2 + $0x10] sm:$0x1] %v388
        %v391 = vld [vmem:[#allocation3] sm:$0xff]
        %v392 = vld [vmem:[#allocation2] sm:$0xff]
        %v393 = vld [vmem:[#allocation2 + $0x8] sm:$0xff]
        %v394 = vld [vmem:[#allocation2 + $0x10] sm:$0xff]
        %vm395 = vcmask 195584
        %v397 = vsel %vm395, %v391, 0
        %399 = vmatpush.msra.mxu0 0.0
        %400 = vmatpush.msra.mxu0 0.0
        %401 = vmatpush.msra.mxu0 0.0
        %402 = vmatpush.msra.mxu0 0.0
        %403 = vmatpush.msra.mxu0 0.0
        %404 = vmatpush.msra.mxu0 0.0
        %405 = vmatpush.msra.mxu0 0.0
        %406 = vmatpush.msra.mxu0 0.0
        %407 = vmatpush.msra.mxu0 0.0
        %408 = vmatpush.msra.mxu0 0.0
        %409 = vmatpush.msra.mxu0 0.0
        %410 = vmatpush.msra.mxu0 0.0
        %411 = vmatpush.msra.mxu0 0.0
        %412 = vmatpush.msra.mxu0 %v394
        %413 = vmatpush.msra.mxu0 %v393
        %414 = vmatpush.msra.mxu0 %v392
        %415 = vmatmul.f32.gmra.mxu0 %v397
        %v416 = vpop.f32.mrf.mxu0
        %v417 = vadd.f32 0.0, %v416
        %418 = vdwg.mxu0
        %419 = vst [vmem:[%s255] sm:$0xff] %v417
        %s420 = sand.u32 %s122, 1
        %s421 = scalar_lea.sflag [#allocation5], %s420
        %s422 = sand.u32 %s122, 1
        %s423 = smul.addr %s422, 8
        %s424 = scalar_lea.vmem [#allocation9], %s423
        // Predicated region
        $region45: #{tpu_custom_call.1} parent=31 // pred_check
          %p425 = pneg %p132
        $region46: #{tpu_custom_call.1} parent=31 // pred_check_branch
          %427 = sbr.rel (%p425) target = $region48
        $region47: #{tpu_custom_call.1} parent=31 // pred_region
          %429 = vsyncadd %s421, 0
          %s430 = sadd.s32 %s26, %s25
          %s431 = smul.addr %s430, 8
          %s432 = scalar_lea.hbm %s3, %s431
          %s434 = sshll.u32 %s424, 4
          %s435 = int_to_ptr.vmem [resolvable:$true] %s434
          %s436 = sshll.u32 %s432, 4
          %s437 = int_to_ptr.hbm [resolvable:$true] %s436
          %439 = dma.vmem_to_hbm [thread:$0]  %s435, 128, %s437, %s421
        $region48: #{tpu_custom_call.1} parent=31 // pred_fallthru
          _
      $region32: #{tpu_custom_call.1} parent=5 // pred_fallthru
        _
      %p440 = scmp.le.s32.totalorder 2, %s16
      // Predicated region
      $region49: #{tpu_custom_call.1} parent=5 // pred_check
        %p441 = pneg %p440
      $region50: #{tpu_custom_call.1} parent=5 // pred_check_branch
        %443 = sbr.rel (%p441) target = $region52
      $region51: #{tpu_custom_call.1} parent=5 // pred_region
        %s444 = ssub.s32 %s16, 2
        // Predicated region
        $region53: #{tpu_custom_call.1} parent=51 // pred_check
          %p445 = pneg %p138
        $region54: #{tpu_custom_call.1} parent=51 // pred_check_branch
          %447 = sbr.rel (%p445) target = $region56
        $region55: #{tpu_custom_call.1} parent=51 // pred_region
          %s448 = sand.u32 %s123, 1
          %s449 = scalar_lea.sflag [#allocation5], %s448
          %s450 = sand.u32 %s123, 1
          %s451 = smul.addr %s450, 8
          %s452 = scalar_lea.vmem [#allocation9], %s451
          %454 = dma.done %s449, 128
        $region56: #{tpu_custom_call.1} parent=51 // pred_fallthru
          _
      $region52: #{tpu_custom_call.1} parent=5 // pred_fallthru
        _
    $region6: #{tpu_custom_call.1} parent=1 // loop_footer
      %s20 = sadd.s32 1, %s16
    $region7: #{tpu_custom_call.1} parent=1 // loop_footer_branch
      %15 = sbr.rel target = $region3
    $region8: #{tpu_custom_call.1} parent=1 // loop_exit
      _
    %455 = vsyncpa [#allocation4], 1
    %s456 = scalar_lea.sflag [#allocation4], 1
    %457 = vsyncpa %s456, 1
    %458 = vsyncpa [#allocation7], 1
    %s459 = scalar_lea.sflag [#allocation7], 1
    %460 = vsyncpa %s459, 1
    %461 = vsyncpa [#allocation5], 1
    %s462 = scalar_lea.sflag [#allocation5], 1
    %463 = vsyncpa %s462, 1

</llo_original>
